<compile_context>
chip_gen: v7x
topology: tpu7x:2x2x1
jax: 0.10.0
libtpu: 0.0.40
codegen_flags: <defaults>
</compile_context>

<pallas_src>
import functools

import jax
import jax.numpy as jnp
from jax.experimental import pallas as pl
from jax.experimental.pallas import tpu as pltpu

_LANE = 128
_SUBLANE = 8
_F32 = 4


def _round_up(x, m):
    return ((x + m - 1) // m) * m


def _vmem_budget_bytes():
    """~80% of this generation's physical VMEM (v7x: 64 MiB/TC, v5e/v6e: 128 MiB)."""
    try:
        cap = int(pltpu.get_tpu_info().vmem_capacity_bytes)
    except Exception:
        cap = 64 * 1024 * 1024          # conservative fallback (v7x per-TC size)
    return int(cap * 4 // 5)


# --------------------- fused single-pass kernel (x resident) ---------------------

def _nn_bn_relu_kernel(x_ref, w_ref, gb_ref, o_ref, *, apply_relu, eps):
    # Linear (MXU).  The nn.Linear bias is intentionally NOT applied:
    # training-mode BatchNorm subtracts the per-feature batch mean of y, which
    # cancels a per-feature bias exactly, so omitting it is a numerical no-op.
    y = jnp.dot(x_ref[...], w_ref[...], preferred_element_type=jnp.float32)

    # BatchNorm1d training-mode batch statistics (biased variance), one-pass
    # f32 moments -> only (1, TN) temporaries.
    inv_n = 1.0 / y.shape[0]
    mean = jnp.sum(y, axis=0, keepdims=True) * inv_n
    mean_sq = jnp.sum(y * y, axis=0, keepdims=True) * inv_n
    var = jnp.maximum(mean_sq - mean * mean, 0.0)          # guard rounding
    inv_std = jax.lax.rsqrt(var + eps)                     # EUP slot (free-ish)

    # Fold the BN affine into one per-feature scale/shift: 2 VALU ops/element.
    a = gb_ref[0:1, :] * inv_std                           # gamma * inv_std
    c = gb_ref[1:2, :] - mean * a                          # beta - mean * a
    out = y * a + c
    if apply_relu:
        out = jnp.maximum(out, 0.0)
    o_ref[...] = out.astype(o_ref.dtype)


def _resident_plan_bytes(B, nin, TN, x_buffers=2):
    x_b = x_buffers * B * nin * _F32          # resident x (count 2 to be safe)
    w_b = 2 * nin * TN * _F32                 # double-buffered weight tile
    p_b = 2 * _SUBLANE * TN * _F32            # (2, TN) params, 8-sublane padded
    o_b = 2 * B * TN * _F32                   # double-buffered out tile
    tmp = 3 * B * TN * _F32                   # y, y*y, out temporaries
    return x_b + w_b + p_b + o_b + tmp


def _pick_feature_tile(nout_p, B, nin, budget):
    cands = [c for c in range(min(nout_p, 1024), 0, -_LANE) if nout_p % c == 0]
    if nout_p >= 2 * _LANE:
        # Keep >=2 feature tiles so the "parallel" grid axis can be sharded
        # across both TensorCores on v7x (no-op on single-TC v5e/v6e).
        cands = [c for c in cands if c < nout_p] or cands
    for c in cands:
        if _resident_plan_bytes(B, nin, c) <= budget:
            return c
    return None


def _forward_resident(x, w_t, gb, *, relu, eps, TN, budget):
    B, nin = x.shape
    nout_p = w_t.shape[1]
    n_tiles = nout_p // TN

    kernel = functools.partial(_nn_bn_relu_kernel, apply_relu=relu, eps=eps)
    est = _resident_plan_bytes(B, nin, TN)
    vmem_limit = int(min(budget, max(est + est // 4, 16 * 1024 * 1024)))
    cost = pl.CostEstimate(
        flops=2 * B * nin * nout_p,
        transcendentals=nout_p,
        bytes_accessed=_F32 * (B * nin + nin * nout_p + B * nout_p + 2 * nout_p),
    )

    w_spec = pl.BlockSpec((nin, TN), lambda j: (0, j))
    gb_spec = pl.BlockSpec((2, TN), lambda j: (0, j))

    def _run(x_spec):
        return pl.pallas_call(
            kernel,
            out_shape=jax.ShapeDtypeStruct((B, nout_p), jnp.float32),
            grid=(n_tiles,),
            in_specs=[x_spec, w_spec, gb_spec],
            out_specs=pl.BlockSpec((B, TN), lambda j: (0, j)),
            compiler_params=pltpu.CompilerParams(
                dimension_semantics=("parallel",),     # both TCs on v7x
                vmem_limit_bytes=vmem_limit,
            ),
            cost_estimate=cost,
        )(x, w_t, gb)

    try:
        # x's block index is constant across the grid: a single VMEM buffer is
        # enough (saves B*nin*4 bytes vs. the default 2-deep buffering).
        return _run(pl.BlockSpec((B, nin), lambda j: (0, 0),
                                 pipeline_mode=pl.Buffered(1)))
    except Exception:
        # Fallback for JAX/Mosaic builds that reject pipeline_mode/Buffered(1).
        return _run(pl.BlockSpec((B, nin), lambda j: (0, 0)))


# ---------------- two-pass batch-tiled path (x too large for VMEM) ----------------

def _bn_stats_kernel(x_ref, w_ref, gb_ref, y_ref, sc_ref, sum_ref, sumsq_ref,
                     *, eps, n_total):
    b = pl.program_id(1)

    y = jnp.dot(x_ref[...], w_ref[...], preferred_element_type=jnp.float32)
    y_ref[...] = y

    @pl.when(b == 0)
    def _():
        sum_ref[...] = jnp.zeros_like(sum_ref)
        sumsq_ref[...] = jnp.zeros_like(sumsq_ref)

    sum_ref[...] += jnp.sum(y, axis=0, keepdims=True)
    sumsq_ref[...] += jnp.sum(y * y, axis=0, keepdims=True)

    @pl.when(b == pl.num_programs(1) - 1)
    def _():
        inv_n = 1.0 / n_total
        mean = sum_ref[...] * inv_n
        var = jnp.maximum(sumsq_ref[...] * inv_n - mean * mean, 0.0)
        inv_std = jax.lax.rsqrt(var + eps)
        a = gb_ref[0:1, :] * inv_std
        c = gb_ref[1:2, :] - mean * a
        sc_ref[0:1, :] = a
        sc_ref[1:2, :] = c


def _bn_norm_kernel(y_ref, sc_ref, o_ref, *, apply_relu):
    out = y_ref[...] * sc_ref[0:1, :] + sc_ref[1:2, :]
    if apply_relu:
        out = jnp.maximum(out, 0.0)
    o_ref[...] = out.astype(o_ref.dtype)


def _batch_plan_bytes(TB, nin, TN):
    x_b = 2 * TB * nin * _F32
    w_b = 2 * nin * TN * _F32
    p_b = 2 * _SUBLANE * TN * _F32
    y_b = 2 * TB * TN * _F32
    sc_b = 2 * _SUBLANE * TN * _F32
    scr = 2 * _SUBLANE * TN * _F32
    tmp = 3 * TB * TN * _F32
    return x_b + w_b + p_b + y_b + sc_b + scr + tmp


def _pick_batch_tiles(B, nin, nout_p, budget):
    if B % _SUBLANE != 0:
        return None, None
    tn_cands = [c for c in range(min(nout_p, 512), 0, -_LANE) if nout_p % c == 0]
    tb_cands = [t for t in (2048, 1024, 512, 256, 128, 64, 32, 16, 8) if B % t == 0]
    for TN in tn_cands:
        for TB in tb_cands:
            if _batch_plan_bytes(TB, nin, TN) <= budget:
                return TB, TN
    return None, None


def _forward_batch_tiled(x, w_t, gb, *, relu, eps, TB, TN, budget):
    """Exact full-batch BN statistics without keeping x resident in VMEM."""
    B, nin = x.shape
    nout_p = w_t.shape[1]
    n_b = B // TB
    n_f = nout_p // TN

    vmem_limit = int(min(budget, max(_batch_plan_bytes(TB, nin, TN) * 5 // 4,
                                     16 * 1024 * 1024)))

    # Pass 1: y = x @ W tiles, accumulate per-feature sum / sum-of-squares in
    # VMEM scratch across the "arbitrary" batch axis, fold BN affine into a
    # per-feature (scale, shift) on the last batch step.
    stats_kernel = functools.partial(_bn_stats_kernel, eps=eps, n_total=B)
    y, sc = pl.pallas_call(
        stats_kernel,
        out_shape=(jax.ShapeDtypeStruct((B, nout_p), jnp.float32),
                   jax.ShapeDtypeStruct((2, nout_p), jnp.float32)),
        grid=(n_f, n_b),
        in_specs=[
            pl.BlockSpec((TB, nin), lambda j, b: (b, 0)),
            pl.BlockSpec((nin, TN), lambda j, b: (0, j)),
            pl.BlockSpec((2, TN), lambda j, b: (0, j)),
        ],
        out_specs=(pl.BlockSpec((TB, TN), lambda j, b: (b, j)),
                   pl.BlockSpec((2, TN), lambda j, b: (0, j))),
        scratch_shapes=[pltpu.VMEM((1, TN), jnp.float32),
                        pltpu.VMEM((1, TN), jnp.float32)],
        compiler_params=pltpu.CompilerParams(
            dimension_semantics=("parallel", "arbitrary"),
            vmem_limit_bytes=vmem_limit,
        ),
    )(x, w_t, gb)

    # Pass 2: lane-dense elementwise normalize (+ ReLU).
    norm_kernel = functools.partial(_bn_norm_kernel, apply_relu=relu)
    return pl.pallas_call(
        norm_kernel,
        out_shape=jax.ShapeDtypeStruct((B, nout_p), jnp.float32),
        grid=(n_f, n_b),
        in_specs=[
            pl.BlockSpec((TB, TN), lambda j, b: (b, j)),
            pl.BlockSpec((2, TN), lambda j, b: (0, j)),
        ],
        out_specs=pl.BlockSpec((TB, TN), lambda j, b: (b, j)),
        compiler_params=pltpu.CompilerParams(
            dimension_semantics=("parallel", "parallel"),
            vmem_limit_bytes=vmem_limit,
        ),
    )(y, sc)


# ------------------------------- public wrapper -------------------------------

def nn_bn_relu_forward(x, w_t, gamma, beta, *, relu=True, eps=1e-5):
    """Forward of nn_bn_relu.

    x:     (B, nin) f32 activations.
    w_t:   (nin, nout) Linear weight, transposed ONCE at parameter setup.
           (May be stored in bfloat16 for weight-stream-bound small-B cases on
           v5e/v6e — numerics-accepted change; MXU still accumulates in f32.)
    gamma, beta: (nout,) BatchNorm affine parameters.

    The nn.Linear bias is not an input: training-mode BatchNorm's mean
    subtraction cancels it exactly, so it never needs to enter the kernel.
    """
    B, nin = x.shape
    nout = w_t.shape[1]
    nout_p = _round_up(nout, _LANE)

    if nout_p != nout:
        # Pad the feature axis once so the out_spec stays lane-dense (no masked
        # partial stores) and the weight pipeline stays 128-multiple tiled.
        w_t = jnp.pad(w_t, ((0, 0), (0, nout_p - nout)))
        gamma = jnp.pad(gamma, (0, nout_p - nout), constant_values=1.0)
        beta = jnp.pad(beta, (0, nout_p - nout))
    gb = jnp.stack([gamma.astype(jnp.float32), beta.astype(jnp.float32)], axis=0)

    budget = _vmem_budget_bytes()
    TN = _pick_feature_tile(nout_p, B, nin, budget)
    if TN is not None:
        out = _forward_resident(x, w_t, gb, relu=relu, eps=eps, TN=TN,
                                budget=budget)
    else:
        TB, TNb = _pick_batch_tiles(B, nin, nout_p, budget)
        if TB is None:
            # TODO(synk): masked batch tiling for B not divisible by 8 that also
            # exceeds VMEM; fall back to the resident path with the minimal tile.
            out = _forward_resident(x, w_t, gb, relu=relu, eps=eps, TN=_LANE,
                                    budget=budget)
        else:
            out = _forward_batch_tiled(x, w_t, gb, relu=relu, eps=eps,
                                       TB=TB, TN=TNb, budget=budget)

    return out[:, :nout] if nout_p != nout else out


# ----------------------------------- tests -----------------------------------

def _reference(x, weight, bias, gamma, beta, relu, eps=1e-5):
    y = x @ weight.T + bias
    mean = y.mean(axis=0, keepdims=True)
    var = ((y - mean) ** 2).mean(axis=0, keepdims=True)   # biased (training mode)
    out = (y - mean) / jnp.sqrt(var + eps) * gamma + beta
    return jnp.maximum(out, 0.0) if relu else out


if __name__ == "__main__":
    key = jax.random.PRNGKey(0)

    def make_params(k, nin, nout):
        kw, kb, kg, ke = jax.random.split(k, 4)
        bound = 1.0 / (nin ** 0.5)
        weight = jax.random.uniform(kw, (nout, nin), minval=-bound, maxval=bound,
                                    dtype=jnp.float32)      # PyTorch (nout, nin)
        bias = jax.random.uniform(kb, (nout,), minval=-bound, maxval=bound,
                                  dtype=jnp.float32)
        gamma = 1.0 + 0.1 * jax.random.normal(kg, (nout,), dtype=jnp.float32)
        beta = 0.1 * jax.random.normal(ke, (nout,), dtype=jnp.float32)
        return weight, bias, gamma, beta

    k1, k2, k3, k4 = jax.random.split(key, 4)

    # 1) Fused resident path at small module-consistent shapes (B=8, 32 -> 128).
    B, NIN, NOUT = 8, 32, 128
    x = jax.random.normal(k1, (B, NIN), dtype=jnp.float32)
    weight, bias, gamma, beta = make_params(k2, NIN, NOUT)
    w_t = jnp.asarray(weight.T)          # transpose ONCE at parameter setup

    out = jax.block_until_ready(nn_bn_relu_forward(x, w_t, gamma, beta, relu=True))
    ref = _reference(x, weight, bias, gamma, beta, relu=True)
    assert out.shape == ref.shape
    assert jnp.allclose(out, ref, atol=1e-4, rtol=1e-4), "relu=True mismatch"

    out_nr = jax.block_until_ready(
        nn_bn_relu_forward(x, w_t, gamma, beta, relu=False))
    ref_nr = _reference(x, weight, bias, gamma, beta, relu=False)
    assert jnp.allclose(out_nr, ref_nr, atol=1e-4, rtol=1e-4), "relu=False mismatch"

    # 2) nout not a multiple of 128 -> padded feature axis, sliced output.
    NOUT2 = 96
    weight2, bias2, gamma2, beta2 = make_params(k3, NIN, NOUT2)
    out2 = jax.block_until_ready(
        nn_bn_relu_forward(x, jnp.asarray(weight2.T), gamma2, beta2, relu=True))
    ref2 = _reference(x, weight2, bias2, gamma2, beta2, relu=True)
    assert out2.shape == (B, NOUT2)
    assert jnp.allclose(out2, ref2, atol=1e-4, rtol=1e-4), "padded-nout mismatch"

    # 3) Two-pass batch-tiled path, exercised directly at small shapes.
    B3, NIN3, NOUT3 = 32, 64, 256
    x3 = jax.random.normal(k4, (B3, NIN3), dtype=jnp.float32)
    weight3, bias3, gamma3, beta3 = make_params(k2, NIN3, NOUT3)
    gb3 = jnp.stack([gamma3, beta3], axis=0)
    out3 = jax.block_until_ready(
        _forward_batch_tiled(x3, jnp.asarray(weight3.T), gb3, relu=True, eps=1e-5,
                             TB=16, TN=128, budget=_vmem_budget_bytes()))
    ref3 = _reference(x3, weight3, bias3, gamma3, beta3, relu=True)
    assert jnp.allclose(out3, ref3, atol=1e-4, rtol=1e-4), "batch-tiled mismatch"

    print("KERNEL_OK")
</pallas_src>

<mosaic_0001>
module attributes {stable_mosaic.version = 11 : i64} {
  func.func @_nn_bn_relu_kernel(%arg0: i32, %arg1: memref<8x32xf32, #tpu.memory_space<vmem>>, %arg2: memref<32x128xf32, #tpu.memory_space<vmem>>, %arg3: memref<2x128xf32, #tpu.memory_space<vmem>>, %arg4: memref<8x128xf32, #tpu.memory_space<vmem>>) attributes {dimension_semantics = [#tpu.dimension_semantics<parallel>], iteration_bounds = array<i64: 1>, scalar_prefetch = 0 : i64, scratch_operands = 0 : i64, tpu.core_type = #tpu.core_type<tc>, window_params = [{pipeline_mode = #tpu.pipeline_mode<synchronous>, transform_indices = @transform_0, window_bounds = array<i64: 8, 32>}, {transform_indices = @transform_1, window_bounds = array<i64: 32, 128>}, {transform_indices = @transform_2, window_bounds = array<i64: 2, 128>}, {transform_indices = @transform_3, window_bounds = array<i64: 8, 128>}]} {
    %c0 = arith.constant 0 : index
    %c0_0 = arith.constant 0 : index
    %0 = vector.load %arg1[%c0, %c0_0] : memref<8x32xf32, #tpu.memory_space<vmem>>, vector<8x32xf32>
    %c0_1 = arith.constant 0 : index
    %c0_2 = arith.constant 0 : index
    %1 = vector.load %arg2[%c0_1, %c0_2] : memref<32x128xf32, #tpu.memory_space<vmem>>, vector<32x128xf32>
    %cst = arith.constant dense<0.000000e+00> : vector<8x128xf32>
    %2 = tpu.matmul %0, %1, %cst {dimension_numbers = #tpu.dot_dimension_numbers<[1], [0], [0], [1], [0, 0, 1, 1], [], []>} : vector<8x32xf32>, vector<32x128xf32>, vector<8x128xf32> -> vector<8x128xf32>
    %cst_3 = arith.constant dense<0.000000e+00> : vector<128xf32>
    %3 = vector.multi_reduction <add>, %2, %cst_3 [0] : vector<8x128xf32> to vector<128xf32>
    %4 = vector.shape_cast %3 : vector<128xf32> to vector<1x128xf32>
    %cst_4 = arith.constant 1.250000e-01 : f32
    %5 = vector.broadcast %cst_4 : f32 to vector<1x128xf32>
    %6 = arith.mulf %4, %5 : vector<1x128xf32>
    %7 = arith.mulf %2, %2 : vector<8x128xf32>
    %cst_5 = arith.constant dense<0.000000e+00> : vector<128xf32>
    %8 = vector.multi_reduction <add>, %7, %cst_5 [0] : vector<8x128xf32> to vector<128xf32>
    %9 = vector.shape_cast %8 : vector<128xf32> to vector<1x128xf32>
    %cst_6 = arith.constant 1.250000e-01 : f32
    %10 = vector.broadcast %cst_6 : f32 to vector<1x128xf32>
    %11 = arith.mulf %9, %10 : vector<1x128xf32>
    %12 = arith.mulf %6, %6 : vector<1x128xf32>
    %13 = arith.subf %11, %12 : vector<1x128xf32>
    %cst_7 = arith.constant 0.000000e+00 : f32
    %14 = vector.broadcast %cst_7 : f32 to vector<1x128xf32>
    %15 = arith.maximumf %13, %14 : vector<1x128xf32>
    %cst_8 = arith.constant 9.99999974E-6 : f32
    %16 = vector.broadcast %cst_8 : f32 to vector<1x128xf32>
    %17 = arith.addf %15, %16 : vector<1x128xf32>
    %18 = math.rsqrt %17 : vector<1x128xf32>
    %c0_9 = arith.constant 0 : index
    %c0_10 = arith.constant 0 : index
    %19 = vector.load %arg3[%c0_9, %c0_10] : memref<2x128xf32, #tpu.memory_space<vmem>>, vector<1x128xf32>
    %20 = arith.mulf %19, %18 : vector<1x128xf32>
    %c1 = arith.constant 1 : index
    %c0_11 = arith.constant 0 : index
    %21 = vector.load %arg3[%c1, %c0_11] : memref<2x128xf32, #tpu.memory_space<vmem>>, vector<1x128xf32>
    %22 = arith.mulf %6, %20 : vector<1x128xf32>
    %23 = arith.subf %21, %22 : vector<1x128xf32>
    %24 = vector.broadcast %20 : vector<1x128xf32> to vector<8x128xf32>
    %25 = arith.mulf %2, %24 : vector<8x128xf32>
    %26 = vector.broadcast %23 : vector<1x128xf32> to vector<8x128xf32>
    %27 = arith.addf %25, %26 : vector<8x128xf32>
    %cst_12 = arith.constant 0.000000e+00 : f32
    %28 = vector.broadcast %cst_12 : f32 to vector<8x128xf32>
    %29 = arith.maximumf %27, %28 : vector<8x128xf32>
    %c0_13 = arith.constant 0 : index
    %c0_14 = arith.constant 0 : index
    %30 = vector.load %arg4[%c0_13, %c0_14] : memref<8x128xf32, #tpu.memory_space<vmem>>, vector<8x128xf32>
    tpu.vector_store %arg4[%c0_13, %c0_14], %29 {strides = array<i32>} : memref<8x128xf32, #tpu.memory_space<vmem>>, vector<8x128xf32>,
    return
  }
  func.func @transform_0(%arg0: i32) -> (i32, i32) {
    %c0_i32 = arith.constant 0 : i32
    %c0_i32_0 = arith.constant 0 : i32
    %c0_i32_1 = arith.constant 0 : i32
    return %c0_i32, %c0_i32_0 : i32, i32
  }
  func.func @transform_1(%arg0: i32) -> (i32, i32) {
    %c0_i32 = arith.constant 0 : i32
    %c0_i32_0 = arith.constant 0 : i32
    return %c0_i32, %arg0 : i32, i32
  }
  func.func @transform_2(%arg0: i32) -> (i32, i32) {
    %c0_i32 = arith.constant 0 : i32
    %c0_i32_0 = arith.constant 0 : i32
    return %c0_i32, %arg0 : i32, i32
  }
  func.func @transform_3(%arg0: i32) -> (i32, i32) {
    %c0_i32 = arith.constant 0 : i32
    %c0_i32_0 = arith.constant 0 : i32
    return %c0_i32, %arg0 : i32, i32
  }
}

module attributes {stable_mosaic.version = 11 : i64} {
  func.func @_nn_bn_relu_kernel(%arg0: i32, %arg1: memref<8x32xf32, #tpu.memory_space<vmem>>, %arg2: memref<32x128xf32, #tpu.memory_space<vmem>>, %arg3: memref<2x128xf32, #tpu.memory_space<vmem>>, %arg4: memref<8x128xf32, #tpu.memory_space<vmem>>) attributes {dimension_semantics = [#tpu.dimension_semantics<parallel>], iteration_bounds = array<i64: 1>, scalar_prefetch = 0 : i64, scratch_operands = 0 : i64, tpu.core_type = #tpu.core_type<tc>, window_params = [{pipeline_mode = #tpu.pipeline_mode<synchronous>, transform_indices = @transform_0, window_bounds = array<i64: 8, 32>}, {transform_indices = @transform_1, window_bounds = array<i64: 32, 128>}, {transform_indices = @transform_2, window_bounds = array<i64: 2, 128>}, {transform_indices = @transform_3, window_bounds = array<i64: 8, 128>}]} {
    %c0 = arith.constant 0 : index
    %c0_0 = arith.constant 0 : index
    %0 = vector.load %arg1[%c0, %c0_0] : memref<8x32xf32, #tpu.memory_space<vmem>>, vector<8x32xf32>
    %c0_1 = arith.constant 0 : index
    %c0_2 = arith.constant 0 : index
    %1 = vector.load %arg2[%c0_1, %c0_2] : memref<32x128xf32, #tpu.memory_space<vmem>>, vector<32x128xf32>
    %cst = arith.constant dense<0.000000e+00> : vector<8x128xf32>
    %2 = tpu.matmul %0, %1, %cst {dimension_numbers = #tpu.dot_dimension_numbers<[1], [0], [0], [1], [0, 0, 1, 1], [], []>} : vector<8x32xf32>, vector<32x128xf32>, vector<8x128xf32> -> vector<8x128xf32>
    %cst_3 = arith.constant dense<0.000000e+00> : vector<128xf32>
    %3 = vector.multi_reduction <add>, %2, %cst_3 [0] : vector<8x128xf32> to vector<128xf32>
    %4 = vector.shape_cast %3 : vector<128xf32> to vector<1x128xf32>
    %cst_4 = arith.constant 1.250000e-01 : f32
    %5 = vector.broadcast %cst_4 : f32 to vector<1x128xf32>
    %6 = arith.mulf %4, %5 : vector<1x128xf32>
    %7 = arith.mulf %2, %2 : vector<8x128xf32>
    %cst_5 = arith.constant dense<0.000000e+00> : vector<128xf32>
    %8 = vector.multi_reduction <add>, %7, %cst_5 [0] : vector<8x128xf32> to vector<128xf32>
    %9 = vector.shape_cast %8 : vector<128xf32> to vector<1x128xf32>
    %cst_6 = arith.constant 1.250000e-01 : f32
    %10 = vector.broadcast %cst_6 : f32 to vector<1x128xf32>
    %11 = arith.mulf %9, %10 : vector<1x128xf32>
    %12 = arith.mulf %6, %6 : vector<1x128xf32>
    %13 = arith.subf %11, %12 : vector<1x128xf32>
    %cst_7 = arith.constant 0.000000e+00 : f32
    %14 = vector.broadcast %cst_7 : f32 to vector<1x128xf32>
    %15 = arith.maximumf %13, %14 : vector<1x128xf32>
    %cst_8 = arith.constant 9.99999974E-6 : f32
    %16 = vector.broadcast %cst_8 : f32 to vector<1x128xf32>
    %17 = arith.addf %15, %16 : vector<1x128xf32>
    %18 = math.rsqrt %17 : vector<1x128xf32>
    %c0_9 = arith.constant 0 : index
    %c0_10 = arith.constant 0 : index
    %19 = vector.load %arg3[%c0_9, %c0_10] : memref<2x128xf32, #tpu.memory_space<vmem>>, vector<1x128xf32>
    %20 = arith.mulf %19, %18 : vector<1x128xf32>
    %c1 = arith.constant 1 : index
    %c0_11 = arith.constant 0 : index
    %21 = vector.load %arg3[%c1, %c0_11] : memref<2x128xf32, #tpu.memory_space<vmem>>, vector<1x128xf32>
    %22 = arith.mulf %6, %20 : vector<1x128xf32>
    %23 = arith.subf %21, %22 : vector<1x128xf32>
    %24 = vector.broadcast %20 : vector<1x128xf32> to vector<8x128xf32>
    %25 = arith.mulf %2, %24 : vector<8x128xf32>
    %26 = vector.broadcast %23 : vector<1x128xf32> to vector<8x128xf32>
    %27 = arith.addf %25, %26 : vector<8x128xf32>
    %cst_12 = arith.constant 0.000000e+00 : f32
    %28 = vector.broadcast %cst_12 : f32 to vector<8x128xf32>
    %29 = arith.maximumf %27, %28 : vector<8x128xf32>
    %c0_13 = arith.constant 0 : index
    %c0_14 = arith.constant 0 : index
    %30 = vector.load %arg4[%c0_13, %c0_14] : memref<8x128xf32, #tpu.memory_space<vmem>>, vector<8x128xf32>
    tpu.vector_store %arg4[%c0_13, %c0_14], %29 {strides = array<i32>} : memref<8x128xf32, #tpu.memory_space<vmem>>, vector<8x128xf32>,
    return
  }
  func.func @transform_0(%arg0: i32) -> (i32, i32) {
    %c0_i32 = arith.constant 0 : i32
    %c0_i32_0 = arith.constant 0 : i32
    %c0_i32_1 = arith.constant 0 : i32
    return %c0_i32, %c0_i32_0 : i32, i32
  }
  func.func @transform_1(%arg0: i32) -> (i32, i32) {
    %c0_i32 = arith.constant 0 : i32
    %c0_i32_0 = arith.constant 0 : i32
    return %c0_i32, %arg0 : i32, i32
  }
  func.func @transform_2(%arg0: i32) -> (i32, i32) {
    %c0_i32 = arith.constant 0 : i32
    %c0_i32_0 = arith.constant 0 : i32
    return %c0_i32, %arg0 : i32, i32
  }
  func.func @transform_3(%arg0: i32) -> (i32, i32) {
    %c0_i32 = arith.constant 0 : i32
    %c0_i32_0 = arith.constant 0 : i32
    return %c0_i32, %arg0 : i32, i32
  }
}

</mosaic_0001>

<llo_original>
// kernel: tpu_custom_call.1
$region0: #{tpu_custom_call.1}
  #allocation0 [shape = 'u32[]', space=smem, size = 0x4, offset = 0x4, fixed_abs, tag = 'smem constant byte address 0x4 - core index']
  #allocation1 [shape = 'u32[144,128]{1,0:T(1,128)}', space=vmem, size = 0x12000, scoped, tag = 'internal scratch']
  %s0 = inlined_call_operand.hbm [shape: f32[8,32], index: 0, kind: input, shape index: {}]
  %s1 = inlined_call_operand.hbm [shape: f32[32,128], index: 1, kind: input, shape index: {}]
  %s2 = inlined_call_operand.vmem [shape: f32[2,128], index: 2, kind: input, shape index: {}]
  %s3 = inlined_call_operand.hbm [shape: f32[8,128], index: 3, kind: output, shape index: {}]
  %s4 = sld [smem:[#allocation0]]
  $region30: #{tpu_custom_call.1} parent=0
    _
  %s6 = ssub.s32 1, %s4
  %s7 = scalar_select 0, %s6, %s4
  $region1: #{tpu_custom_call.1} parent=0
    #allocation2 [shape = 'u8[4096]{0}', space=vmem, size = 0x1000, scoped, tag = 'input window, operand 0, single buffered']
    #allocation3 [shape = 's32[1]{0}', space=sflag, size = 0x4, scoped, tag = 'scoped memory for tpu_custom_call.1']
    #allocation4 [shape = 's32[1]{0}', space=sflag, size = 0x4, scoped, tag = 'scoped memory for tpu_custom_call.1']
    #allocation5 [shape = 'u8[16384]{0}', space=vmem, size = 0x4000, scoped, tag = 'input window, operand 1, single buffered']
    #allocation6 [shape = 's32[1]{0}', space=sflag, size = 0x4, scoped, tag = 'scoped memory for tpu_custom_call.1']
    #allocation7 [shape = 'u8[4096]{0}', space=vmem, size = 0x1000, scoped, tag = 'output window, operand 0, single buffered']
    %8 = vsyncpa [#allocation3], 0
    %9 = vsyncpa [#allocation6], 0
    %10 = vsyncpa [#allocation4], 0
    // Predicated region
    $region2: #{tpu_custom_call.1} parent=1 // pred_check
      _
    $region3: #{tpu_custom_call.1} parent=1 // pred_check_branch
      %12 = sbr.rel (0) target = $region5
    $region4: #{tpu_custom_call.1} parent=1 // pred_region
      %s14 = ssub.s32 128, 128
      %15 = vsyncadd [#allocation3], %s14
      %s17 = sshll.u32 [#allocation2], 4
      %s18 = int_to_ptr.vmem [resolvable:$true] %s17
      %20 = dma.hbm_to_vmem [thread:$0]  %s0, 128, %s18, [#allocation3]
    $region5: #{tpu_custom_call.1} parent=1 // pred_fallthru
      _
    // Predicated region
    $region6: #{tpu_custom_call.1} parent=1 // pred_check
      _
    $region7: #{tpu_custom_call.1} parent=1 // pred_check_branch
      %22 = sbr.rel (0) target = $region9
    $region8: #{tpu_custom_call.1} parent=1 // pred_region
      %s24 = ssub.s32 512, 512
      %25 = vsyncadd [#allocation6], %s24
      %s26 = sshll.u32 [#allocation5], 4
      %s27 = int_to_ptr.vmem [resolvable:$true] %s26
      %32 = dma.hbm_to_vmem [thread:$0]  %s1, 512, %s27, [#allocation6], 128, 128, 8
    $region9: #{tpu_custom_call.1} parent=1 // pred_fallthru
      _
    // Predicated region
    $region10: #{tpu_custom_call.1} parent=1 // pred_check
      _
    $region11: #{tpu_custom_call.1} parent=1 // pred_check_branch
      %34 = sbr.rel (0) target = $region13
    $region12: #{tpu_custom_call.1} parent=1 // pred_region
      _
    $region13: #{tpu_custom_call.1} parent=1 // pred_fallthru
      _
    // Predicated region
    $region14: #{tpu_custom_call.1} parent=1 // pred_check
      _
    $region15: #{tpu_custom_call.1} parent=1 // pred_check_branch
      %36 = sbr.rel (0) target = $region17
    $region16: #{tpu_custom_call.1} parent=1 // pred_region
      %37 = dma.done [#allocation3], 128
    $region17: #{tpu_custom_call.1} parent=1 // pred_fallthru
      _
    // Predicated region
    $region18: #{tpu_custom_call.1} parent=1 // pred_check
      _
    $region19: #{tpu_custom_call.1} parent=1 // pred_check_branch
      %39 = sbr.rel (0) target = $region21
    $region20: #{tpu_custom_call.1} parent=1 // pred_region
      %40 = dma.done [#allocation6], 512
    $region21: #{tpu_custom_call.1} parent=1 // pred_fallthru
      _
    %v41 = vld [vmem:[#allocation2] sm:$0xff]
    %v42 = vld [vmem:[#allocation5] sm:$0xff]
    %v43 = vld [vmem:[#allocation5 + $0x8] sm:$0xff]
    %v44 = vld [vmem:[#allocation5 + $0x10] sm:$0xff]
    %v45 = vld [vmem:[#allocation5 + $0x18] sm:$0xff]
    %vm46 = vcmask 261120
    %v48 = vsel %vm46, %v41, 0
    %50 = vmatprep.subr.mxu0 0.0
    %51 = vmatpush1.msra.mxu0 %v42
    %52 = vmatprep.subr.mxu0 0.0
    %53 = vmatpush1.msra.mxu0 %v43
    %54 = vmatprep.subr.mxu0 0.0
    %55 = vmatpush1.msra.mxu0 %v44
    %56 = vmatprep.subr.mxu0 0.0
    %57 = vmatpush1.msra.mxu0 %v45
    %58 = vmatprep.subr.mxu0 0.0
    %59 = vmatpush1.msra.mxu0 0.0
    %60 = vmatprep.subr.mxu0 0.0
    %61 = vmatpush1.msra.mxu0 0.0
    %62 = vmatprep.subr.mxu0 0.0
    %63 = vmatpush1.msra.mxu0 0.0
    %64 = vmatprep.subr.mxu0 0.0
    %65 = vmatpush1.msra.mxu0 0.0
    %66 = vmatprep.subr.mxu0 0.0
    %67 = vmatpush1.msra.mxu0 0.0
    %68 = vmatprep.subr.mxu0 0.0
    %69 = vmatpush1.msra.mxu0 0.0
    %70 = vmatprep.subr.mxu0 0.0
    %71 = vmatpush1.msra.mxu0 0.0
    %72 = vmatprep.subr.mxu0 0.0
    %73 = vmatpush1.msra.mxu0 0.0
    %74 = vmatprep.subr.mxu0 0.0
    %75 = vmatpush1.msra.mxu0 0.0
    %76 = vmatprep.subr.mxu0 0.0
    %77 = vmatpush1.msra.mxu0 0.0
    %78 = vmatprep.subr.mxu0 0.0
    %79 = vmatpush1.msra.mxu0 0.0
    %80 = vmatprep.subr.mxu0 0.0
    %81 = vmatpush1.msra.mxu0 0.0
    %82 = vmatprep.subr.mxu0 0.0
    %83 = vmatpush1.msra.mxu0 0.0
    %84 = vmatprep.subr.mxu0 0.0
    %85 = vmatpush1.msra.mxu0 0.0
    %86 = vmatprep.subr.mxu0 0.0
    %87 = vmatpush1.msra.mxu0 0.0
    %88 = vmatprep.subr.mxu0 0.0
    %89 = vmatpush1.msra.mxu0 0.0
    %90 = vmatprep.subr.mxu0 0.0
    %91 = vmatpush1.msra.mxu0 0.0
    %92 = vmatprep.subr.mxu0 0.0
    %93 = vmatpush1.msra.mxu0 0.0
    %94 = vmatprep.subr.mxu0 0.0
    %95 = vmatpush1.msra.mxu0 0.0
    %96 = vmatprep.subr.mxu0 0.0
    %97 = vmatpush1.msra.mxu0 0.0
    %98 = vmatprep.subr.mxu0 0.0
    %99 = vmatpush1.msra.mxu0 0.0
    %100 = vmatprep.subr.mxu0 0.0
    %101 = vmatpush1.msra.mxu0 0.0
    %102 = vmatprep.subr.mxu0 0.0
    %103 = vmatpush1.msra.mxu0 0.0
    %104 = vmatprep.subr.mxu0 0.0
    %105 = vmatpush1.msra.mxu0 0.0
    %106 = vmatprep.subr.mxu0 0.0
    %107 = vmatpush1.msra.mxu0 0.0
    %108 = vmatprep.subr.mxu0 0.0
    %109 = vmatpush1.msra.mxu0 0.0
    %110 = vmatprep.subr.mxu0 0.0
    %111 = vmatpush1.msra.mxu0 0.0
    %112 = vmatprep.subr.mxu0 0.0
    %113 = vmatpush1.msra.mxu0 0.0
    %114 = vmatprep.mubr.f32.mxu0 0.0
    %115 = vmatmul.mubr.f32.gmra.mrb[0].mxu0 %v48
    %v116 = vpop.f32.mrb[0].mxu0
    %v117 = vadd.f32 0.0, %v116
    %v118 = vpop.f32.mrb[0].mxu0
    %119 = vdwg.mxu0
    %v120 = vrot.slane %v117, 4
    %v121 = vadd.f32 %v117, %v120
    %v122 = vrot.slane %v121, 2
    %v123 = vadd.f32 %v121, %v122
    %v124 = vrot.slane %v123, 1
    %v125 = vadd.f32 %v123, %v124
    %v126 = vmul.f32 %v125, 0.125
    %v127 = vmul.f32 %v117, %v117
    %v128 = vrot.slane %v127, 4
    %v129 = vadd.f32 %v127, %v128
    %v130 = vrot.slane %v129, 2
    %v131 = vadd.f32 %v129, %v130
    %v132 = vrot.slane %v131, 1
    %v133 = vadd.f32 %v131, %v132
    %v134 = vmul.f32 %v133, 0.125
    %v135 = vmul.f32 %v126, %v126
    %v136 = vsub.f32 %v134, %v135
    %v137 = vmax.f32 %v136, 0.0
    %v138 = vadd.f32 %v137, 1e-05
    %v139 = vrsqrt.pop %v138
    %v140 = vld [vmem:[%s2] sm:$0x1]
    %v141 = vmul.f32 %v140, %v139
    %v142 = vld [vmem:[%s2 + $0x1] sm:$0x1]
    %v143 = vmul.f32 %v126, %v141
    %v144 = vsub.f32 %v142, %v143
    %v145 = vlaneseq
    %v146 = vshrl.u32 %v145, 7
    %v147 = vsub.s32 0, %v146
    %v148 = vrot.slane %v141, %v147
    %v149 = vmul.f32 %v117, %v148
    %v150 = vlaneseq
    %v151 = vshrl.u32 %v150, 7
    %v152 = vsub.s32 0, %v151
    %v153 = vrot.slane %v144, %v152
    %v154 = vadd.f32 %v149, %v153
    %v155 = vmax.f32 %v154, 0.0
    %156 = vst [vmem:[#allocation7] sm:$0xff] %v155
    // Predicated region
    $region22: #{tpu_custom_call.1} parent=1 // pred_check
      _
    $region23: #{tpu_custom_call.1} parent=1 // pred_check_branch
      %158 = sbr.rel (0) target = $region25
    $region24: #{tpu_custom_call.1} parent=1 // pred_region
      %s160 = ssub.s32 128, 128
      %161 = vsyncadd [#allocation4], %s160
      %s163 = sshll.u32 [#allocation7], 4
      %s164 = int_to_ptr.vmem [resolvable:$true] %s163
      %166 = dma.vmem_to_hbm [thread:$0]  %s164, 128, %s3, [#allocation4]
    $region25: #{tpu_custom_call.1} parent=1 // pred_fallthru
      _
    // Predicated region
    $region26: #{tpu_custom_call.1} parent=1 // pred_check
      _
    $region27: #{tpu_custom_call.1} parent=1 // pred_check_branch
      %168 = sbr.rel (0) target = $region29
    $region28: #{tpu_custom_call.1} parent=1 // pred_region
      %169 = dma.done [#allocation4], 128
    $region29: #{tpu_custom_call.1} parent=1 // pred_fallthru
      _
    %170 = vsyncpa [#allocation3], 1
    %171 = vsyncpa [#allocation6], 1
    %172 = vsyncpa [#allocation4], 1

// kernel: tpu_custom_call.1
$region0: #{tpu_custom_call.1}
  #allocation0 [shape = 'u32[]', space=smem, size = 0x4, offset = 0x4, fixed_abs, tag = 'smem constant byte address 0x4 - core index']
  #allocation1 [shape = 'u32[144,128]{1,0:T(1,128)}', space=vmem, size = 0x12000, scoped, tag = 'internal scratch']
  %s0 = inlined_call_operand.hbm [shape: f32[8,32], index: 0, kind: input, shape index: {}]
  %s1 = inlined_call_operand.hbm [shape: f32[32,128], index: 1, kind: input, shape index: {}]
  %s2 = inlined_call_operand.vmem [shape: f32[2,128], index: 2, kind: input, shape index: {}]
  %s3 = inlined_call_operand.hbm [shape: f32[8,128], index: 3, kind: output, shape index: {}]
  %s4 = sld [smem:[#allocation0]]
  $region30: #{tpu_custom_call.1} parent=0
    _
  %s6 = ssub.s32 1, %s4
  %s7 = scalar_select 0, %s6, %s4
  $region1: #{tpu_custom_call.1} parent=0
    #allocation2 [shape = 'u8[4096]{0}', space=vmem, size = 0x1000, scoped, tag = 'input window, operand 0, single buffered']
    #allocation3 [shape = 's32[1]{0}', space=sflag, size = 0x4, scoped, tag = 'scoped memory for tpu_custom_call.1']
    #allocation4 [shape = 's32[1]{0}', space=sflag, size = 0x4, scoped, tag = 'scoped memory for tpu_custom_call.1']
    #allocation5 [shape = 'u8[16384]{0}', space=vmem, size = 0x4000, scoped, tag = 'input window, operand 1, single buffered']
    #allocation6 [shape = 's32[1]{0}', space=sflag, size = 0x4, scoped, tag = 'scoped memory for tpu_custom_call.1']
    #allocation7 [shape = 'u8[4096]{0}', space=vmem, size = 0x1000, scoped, tag = 'output window, operand 0, single buffered']
    %8 = vsyncpa [#allocation3], 0
    %9 = vsyncpa [#allocation6], 0
    %10 = vsyncpa [#allocation4], 0
    // Predicated region
    $region2: #{tpu_custom_call.1} parent=1 // pred_check
      _
    $region3: #{tpu_custom_call.1} parent=1 // pred_check_branch
      %12 = sbr.rel (0) target = $region5
    $region4: #{tpu_custom_call.1} parent=1 // pred_region
      %s14 = ssub.s32 128, 128
      %15 = vsyncadd [#allocation3], %s14
      %s17 = sshll.u32 [#allocation2], 4
      %s18 = int_to_ptr.vmem [resolvable:$true] %s17
      %20 = dma.hbm_to_vmem [thread:$0]  %s0, 128, %s18, [#allocation3]
    $region5: #{tpu_custom_call.1} parent=1 // pred_fallthru
      _
    // Predicated region
    $region6: #{tpu_custom_call.1} parent=1 // pred_check
      _
    $region7: #{tpu_custom_call.1} parent=1 // pred_check_branch
      %22 = sbr.rel (0) target = $region9
    $region8: #{tpu_custom_call.1} parent=1 // pred_region
      %s24 = ssub.s32 512, 512
      %25 = vsyncadd [#allocation6], %s24
      %s26 = sshll.u32 [#allocation5], 4
      %s27 = int_to_ptr.vmem [resolvable:$true] %s26
      %32 = dma.hbm_to_vmem [thread:$0]  %s1, 512, %s27, [#allocation6], 128, 128, 8
    $region9: #{tpu_custom_call.1} parent=1 // pred_fallthru
      _
    // Predicated region
    $region10: #{tpu_custom_call.1} parent=1 // pred_check
      _
    $region11: #{tpu_custom_call.1} parent=1 // pred_check_branch
      %34 = sbr.rel (0) target = $region13
    $region12: #{tpu_custom_call.1} parent=1 // pred_region
      _
    $region13: #{tpu_custom_call.1} parent=1 // pred_fallthru
      _
    // Predicated region
    $region14: #{tpu_custom_call.1} parent=1 // pred_check
      _
    $region15: #{tpu_custom_call.1} parent=1 // pred_check_branch
      %36 = sbr.rel (0) target = $region17
    $region16: #{tpu_custom_call.1} parent=1 // pred_region
      %37 = dma.done [#allocation3], 128
    $region17: #{tpu_custom_call.1} parent=1 // pred_fallthru
      _
    // Predicated region
    $region18: #{tpu_custom_call.1} parent=1 // pred_check
      _
    $region19: #{tpu_custom_call.1} parent=1 // pred_check_branch
      %39 = sbr.rel (0) target = $region21
    $region20: #{tpu_custom_call.1} parent=1 // pred_region
      %40 = dma.done [#allocation6], 512
    $region21: #{tpu_custom_call.1} parent=1 // pred_fallthru
      _
    %v41 = vld [vmem:[#allocation2] sm:$0xff]
    %v42 = vld [vmem:[#allocation5] sm:$0xff]
    %v43 = vld [vmem:[#allocation5 + $0x8] sm:$0xff]
    %v44 = vld [vmem:[#allocation5 + $0x10] sm:$0xff]
    %v45 = vld [vmem:[#allocation5 + $0x18] sm:$0xff]
    %vm46 = vcmask 261120
    %v48 = vsel %vm46, %v41, 0
    %50 = vmatprep.subr.mxu0 0.0
    %51 = vmatpush1.msra.mxu0 %v42
    %52 = vmatprep.subr.mxu0 0.0
    %53 = vmatpush1.msra.mxu0 %v43
    %54 = vmatprep.subr.mxu0 0.0
    %55 = vmatpush1.msra.mxu0 %v44
    %56 = vmatprep.subr.mxu0 0.0
    %57 = vmatpush1.msra.mxu0 %v45
    %58 = vmatprep.subr.mxu0 0.0
    %59 = vmatpush1.msra.mxu0 0.0
    %60 = vmatprep.subr.mxu0 0.0
    %61 = vmatpush1.msra.mxu0 0.0
    %62 = vmatprep.subr.mxu0 0.0
    %63 = vmatpush1.msra.mxu0 0.0
    %64 = vmatprep.subr.mxu0 0.0
    %65 = vmatpush1.msra.mxu0 0.0
    %66 = vmatprep.subr.mxu0 0.0
    %67 = vmatpush1.msra.mxu0 0.0
    %68 = vmatprep.subr.mxu0 0.0
    %69 = vmatpush1.msra.mxu0 0.0
    %70 = vmatprep.subr.mxu0 0.0
    %71 = vmatpush1.msra.mxu0 0.0
    %72 = vmatprep.subr.mxu0 0.0
    %73 = vmatpush1.msra.mxu0 0.0
    %74 = vmatprep.subr.mxu0 0.0
    %75 = vmatpush1.msra.mxu0 0.0
    %76 = vmatprep.subr.mxu0 0.0
    %77 = vmatpush1.msra.mxu0 0.0
    %78 = vmatprep.subr.mxu0 0.0
    %79 = vmatpush1.msra.mxu0 0.0
    %80 = vmatprep.subr.mxu0 0.0
    %81 = vmatpush1.msra.mxu0 0.0
    %82 = vmatprep.subr.mxu0 0.0
    %83 = vmatpush1.msra.mxu0 0.0
    %84 = vmatprep.subr.mxu0 0.0
    %85 = vmatpush1.msra.mxu0 0.0
    %86 = vmatprep.subr.mxu0 0.0
    %87 = vmatpush1.msra.mxu0 0.0
    %88 = vmatprep.subr.mxu0 0.0
    %89 = vmatpush1.msra.mxu0 0.0
    %90 = vmatprep.subr.mxu0 0.0
    %91 = vmatpush1.msra.mxu0 0.0
    %92 = vmatprep.subr.mxu0 0.0
    %93 = vmatpush1.msra.mxu0 0.0
    %94 = vmatprep.subr.mxu0 0.0
    %95 = vmatpush1.msra.mxu0 0.0
    %96 = vmatprep.subr.mxu0 0.0
    %97 = vmatpush1.msra.mxu0 0.0
    %98 = vmatprep.subr.mxu0 0.0
    %99 = vmatpush1.msra.mxu0 0.0
    %100 = vmatprep.subr.mxu0 0.0
    %101 = vmatpush1.msra.mxu0 0.0
    %102 = vmatprep.subr.mxu0 0.0
    %103 = vmatpush1.msra.mxu0 0.0
    %104 = vmatprep.subr.mxu0 0.0
    %105 = vmatpush1.msra.mxu0 0.0
    %106 = vmatprep.subr.mxu0 0.0
    %107 = vmatpush1.msra.mxu0 0.0
    %108 = vmatprep.subr.mxu0 0.0
    %109 = vmatpush1.msra.mxu0 0.0
    %110 = vmatprep.subr.mxu0 0.0
    %111 = vmatpush1.msra.mxu0 0.0
    %112 = vmatprep.subr.mxu0 0.0
    %113 = vmatpush1.msra.mxu0 0.0
    %114 = vmatprep.mubr.f32.mxu0 0.0
    %115 = vmatmul.mubr.f32.gmra.mrb[0].mxu0 %v48
    %v116 = vpop.f32.mrb[0].mxu0
    %v117 = vadd.f32 0.0, %v116
    %v118 = vpop.f32.mrb[0].mxu0
    %119 = vdwg.mxu0
    %v120 = vrot.slane %v117, 4
    %v121 = vadd.f32 %v117, %v120
    %v122 = vrot.slane %v121, 2
    %v123 = vadd.f32 %v121, %v122
    %v124 = vrot.slane %v123, 1
    %v125 = vadd.f32 %v123, %v124
    %v126 = vmul.f32 %v125, 0.125
    %v127 = vmul.f32 %v117, %v117
    %v128 = vrot.slane %v127, 4
    %v129 = vadd.f32 %v127, %v128
    %v130 = vrot.slane %v129, 2
    %v131 = vadd.f32 %v129, %v130
    %v132 = vrot.slane %v131, 1
    %v133 = vadd.f32 %v131, %v132
    %v134 = vmul.f32 %v133, 0.125
    %v135 = vmul.f32 %v126, %v126
    %v136 = vsub.f32 %v134, %v135
    %v137 = vmax.f32 %v136, 0.0
    %v138 = vadd.f32 %v137, 1e-05
    %v139 = vrsqrt.pop %v138
    %v140 = vld [vmem:[%s2] sm:$0x1]
    %v141 = vmul.f32 %v140, %v139
    %v142 = vld [vmem:[%s2 + $0x1] sm:$0x1]
    %v143 = vmul.f32 %v126, %v141
    %v144 = vsub.f32 %v142, %v143
    %v145 = vlaneseq
    %v146 = vshrl.u32 %v145, 7
    %v147 = vsub.s32 0, %v146
    %v148 = vrot.slane %v141, %v147
    %v149 = vmul.f32 %v117, %v148
    %v150 = vlaneseq
    %v151 = vshrl.u32 %v150, 7
    %v152 = vsub.s32 0, %v151
    %v153 = vrot.slane %v144, %v152
    %v154 = vadd.f32 %v149, %v153
    %v155 = vmax.f32 %v154, 0.0
    %156 = vst [vmem:[#allocation7] sm:$0xff] %v155
    // Predicated region
    $region22: #{tpu_custom_call.1} parent=1 // pred_check
      _
    $region23: #{tpu_custom_call.1} parent=1 // pred_check_branch
      %158 = sbr.rel (0) target = $region25
    $region24: #{tpu_custom_call.1} parent=1 // pred_region
      %s160 = ssub.s32 128, 128
      %161 = vsyncadd [#allocation4], %s160
      %s163 = sshll.u32 [#allocation7], 4
      %s164 = int_to_ptr.vmem [resolvable:$true] %s163
      %166 = dma.vmem_to_hbm [thread:$0]  %s164, 128, %s3, [#allocation4]
    $region25: #{tpu_custom_call.1} parent=1 // pred_fallthru
      _
    // Predicated region
    $region26: #{tpu_custom_call.1} parent=1 // pred_check
      _
    $region27: #{tpu_custom_call.1} parent=1 // pred_check_branch
      %168 = sbr.rel (0) target = $region29
    $region28: #{tpu_custom_call.1} parent=1 // pred_region
      %169 = dma.done [#allocation4], 128
    $region29: #{tpu_custom_call.1} parent=1 // pred_fallthru
      _
    %170 = vsyncpa [#allocation3], 1
    %171 = vsyncpa [#allocation6], 1
    %172 = vsyncpa [#allocation4], 1

</llo_original>
